<compile_context>
chip_gen: v7x
topology: tpu7x:2x2x1
jax: 0.10.0
libtpu: 0.0.40
codegen_flags: <defaults>
</compile_context>

<pallas_src>
import functools

import jax
import jax.numpy as jnp
from jax.experimental import pallas as pl
from jax.experimental.pallas import tpu as pltpu


def _round_up(x, m):
    return ((x + m - 1) // m) * m


# ----------------------------------------------------------------------------
# Kernels
# ----------------------------------------------------------------------------
def _fc_kernel_single_k(x_ref, w_ref, b_ref, o_ref, *, use_activation, mxu_dtype):
    """K fits in one block: no accumulator, direct store of (x @ W + b)."""
    x = x_ref[...]
    if use_activation:
        # tanh in f32 on the EUP (v5e has no bf16 EUP), then cast to the MXU dtype.
        x = jnp.tanh(x.astype(jnp.float32))
    x = x.astype(mxu_dtype)
    acc = jnp.dot(x, w_ref[...], preferred_element_type=jnp.float32)
    o_ref[...] = (acc + b_ref[...].astype(jnp.float32)).astype(o_ref.dtype)


def _fc_kernel_tiled_k(x_ref, w_ref, b_ref, o_ref, acc_ref, *, use_activation,
                       mxu_dtype):
    """K tiled: f32 VMEM accumulator, assigned (not zero-init + add) at k==0."""
    k = pl.program_id(2)

    x = x_ref[...]
    if use_activation:
        x = jnp.tanh(x.astype(jnp.float32))
    x = x.astype(mxu_dtype)
    partial = jnp.dot(x, w_ref[...], preferred_element_type=jnp.float32)

    @pl.when(k == 0)
    def _():
        acc_ref[...] = partial

    @pl.when(k > 0)
    def _():
        acc_ref[...] += partial

    @pl.when(k == pl.num_programs(2) - 1)
    def _():
        o_ref[...] = (acc_ref[...] + b_ref[...].astype(jnp.float32)).astype(o_ref.dtype)


# ----------------------------------------------------------------------------
# One-time parameter preparation (hoisted out of the per-call path)
# ----------------------------------------------------------------------------
def prepare_fc_params(weight, bias, mxu_dtype=jnp.bfloat16):
    """Transpose W to (in_dim, out_dim), pad both dims to 128 multiples, cast.

    weight: (output_dim, input_dim) -- PyTorch nn.Linear convention.
    bias:   (output_dim,)
    Returns (w_padded[(K_pad, N_pad), mxu_dtype], b_padded[(1, N_pad), f32],
             in_dim, out_dim).
    Zero padding is exact: tanh(0)=0 and padded weight rows/cols are zero.
    """
    out_dim, in_dim = weight.shape
    k_pad = _round_up(in_dim, 128)
    n_pad = _round_up(out_dim, 128)
    w = jnp.zeros((k_pad, n_pad), mxu_dtype)
    w = w.at[:in_dim, :out_dim].set(weight.T.astype(mxu_dtype))
    b = jnp.zeros((1, n_pad), jnp.float32)
    b = b.at[0, :out_dim].set(bias.astype(jnp.float32))
    return w, b, in_dim, out_dim


# ----------------------------------------------------------------------------
# Forward wrapper
# ----------------------------------------------------------------------------
def fc_layer(x, params, use_activation=True, dropout_rate=0.0):
    """Pallas implementation of FCLayer.forward.

    x:      (B, input_dim)
    params: output of prepare_fc_params(weight, bias)
    returns (B, output_dim) in x.dtype
    """
    # TODO(synk): training-mode dropout with rate > 0 not implemented (identity
    # here, matching the module's default dropout_rate=0.0 / eval mode).
    assert dropout_rate == 0.0

    w, b, in_dim, out_dim = params
    B, in_dim_x = x.shape
    assert in_dim_x == in_dim, (in_dim_x, in_dim)
    k_pad, n_pad = w.shape
    mxu_dtype = w.dtype

    # ---- tile sizes ---------------------------------------------------------
    # M: batch tile (sublane axis), multiple of 16 (bf16 sublane packing), <=512.
    tile_m = min(512, _round_up(B, 16))
    pad_m = _round_up(B, tile_m)

    # N: one full block when it fits (all R-BERT layers: out_dim <= 768
    # -> n_pad <= 768), which keeps the weight VMEM-resident across M tiles,
    # collapses the grid and makes stores lane-dense. Otherwise tile at 256/128.
    if n_pad <= 1024:
        tile_n = n_pad
    else:
        tile_n = 256 if n_pad % 256 == 0 else 128

    # K: single block when it fits comfortably in VMEM (all R-BERT layers:
    # in_dim <= 2304). Otherwise tile K and accumulate in f32 scratch.
    if k_pad <= 4096:
        tile_k = k_pad
    elif k_pad % 2048 == 0:
        tile_k = 2048
    elif k_pad % 1024 == 0:
        tile_k = 1024
    else:
        tile_k = 128
    single_k = (tile_k == k_pad)

    # Only the activation is padded per call (R-BERT in_dims 768/2304 are
    # already 128 multiples, so K padding is usually a no-op).
    xp = x
    if pad_m != B or k_pad != in_dim:
        xp = jnp.pad(x, ((0, pad_m - B), (0, k_pad - in_dim)))

    x_bytes = jnp.dtype(x.dtype).itemsize
    w_bytes = jnp.dtype(mxu_dtype).itemsize
    o_bytes = jnp.dtype(x.dtype).itemsize
    block_bytes = (2 * tile_m * tile_k * x_bytes          # double-buffered x
                   + 2 * tile_k * tile_n * w_bytes        # double-buffered W
                   + 2 * 8 * tile_n * 4                   # bias (sublane-padded)
                   + 2 * tile_m * tile_n * o_bytes)       # double-buffered out
    if not single_k:
        block_bytes += tile_m * tile_n * 4                # f32 accumulator
    # Headroom for Pallas internals, capped under v7x's 64 MiB physical VMEM.
    vmem_limit = min(56 * 1024 * 1024, block_bytes + 16 * 1024 * 1024)

    if single_k:
        grid = (pad_m // tile_m, n_pad // tile_n)
        kernel = functools.partial(_fc_kernel_single_k,
                                   use_activation=use_activation,
                                   mxu_dtype=mxu_dtype)
        in_specs = [
            pl.BlockSpec((tile_m, tile_k), lambda m, n: (m, 0)),
            pl.BlockSpec((tile_k, tile_n), lambda m, n: (0, n)),
            pl.BlockSpec((1, tile_n), lambda m, n: (0, n)),
        ]
        out_specs = pl.BlockSpec((tile_m, tile_n), lambda m, n: (m, n))
        scratch_shapes = []
        dim_sem = ("parallel", "parallel")
    else:
        grid = (pad_m // tile_m, n_pad // tile_n, k_pad // tile_k)
        kernel = functools.partial(_fc_kernel_tiled_k,
                                   use_activation=use_activation,
                                   mxu_dtype=mxu_dtype)
        in_specs = [
            pl.BlockSpec((tile_m, tile_k), lambda m, n, k: (m, k)),
            pl.BlockSpec((tile_k, tile_n), lambda m, n, k: (k, n)),
            pl.BlockSpec((1, tile_n), lambda m, n, k: (0, n)),
        ]
        out_specs = pl.BlockSpec((tile_m, tile_n), lambda m, n, k: (m, n))
        scratch_shapes = [pltpu.VMEM((tile_m, tile_n), jnp.float32)]
        dim_sem = ("parallel", "parallel", "arbitrary")

    out = pl.pallas_call(
        kernel,
        out_shape=jax.ShapeDtypeStruct((pad_m, n_pad), x.dtype),
        grid_spec=pltpu.PrefetchScalarGridSpec(
            num_scalar_prefetch=0,
            grid=grid,
            in_specs=in_specs,
            out_specs=out_specs,
            scratch_shapes=scratch_shapes,
        ),
        compiler_params=pltpu.CompilerParams(
            dimension_semantics=dim_sem,
            vmem_limit_bytes=vmem_limit,
        ),
    )(xp, w, b)

    return out[:B, :out_dim]


if __name__ == "__main__":
    # Small shapes consistent with the module: x is (batch, input_dim).
    batch, input_dim, output_dim = 8, 32, 16

    key = jax.random.PRNGKey(0)
    kx, kw, kb = jax.random.split(key, 3)

    x = jax.random.normal(kx, (batch, input_dim), dtype=jnp.float32)

    # Deterministic init mimicking nn.Linear's uniform(-1/sqrt(in), 1/sqrt(in)).
    bound = 1.0 / jnp.sqrt(jnp.float32(input_dim))
    weight = jax.random.uniform(kw, (output_dim, input_dim),
                                minval=-bound, maxval=bound, dtype=jnp.float32)
    bias = jax.random.uniform(kb, (output_dim,),
                              minval=-bound, maxval=bound, dtype=jnp.float32)

    # (1) Default path: use_activation=True, bf16 MXU operands, f32 accumulation.
    params_bf16 = prepare_fc_params(weight, bias)  # one-time prep (pad + transpose + cast)
    out = jax.block_until_ready(fc_layer(x, params_bf16, use_activation=True))
    ref = jnp.tanh(x) @ weight.T + bias
    assert out.shape == (batch, output_dim)
    assert jnp.allclose(out, ref, atol=5e-2, rtol=5e-2), float(jnp.max(jnp.abs(out - ref)))

    # (2) use_activation=False path with f32 MXU operands (tight tolerance).
    params_f32 = prepare_fc_params(weight, bias, mxu_dtype=jnp.float32)
    out_na = jax.block_until_ready(fc_layer(x, params_f32, use_activation=False))
    ref_na = x @ weight.T + bias
    assert jnp.allclose(out_na, ref_na, atol=1e-5, rtol=1e-5), float(jnp.max(jnp.abs(out_na - ref_na)))

    # (3) Exercise the K-tiled accumulator fallback (in_dim > 4096).
    big_in = 8192
    kx2, kw2 = jax.random.split(jax.random.PRNGKey(1), 2)
    x_big = jax.random.normal(kx2, (batch, big_in), dtype=jnp.float32)
    bound2 = 1.0 / jnp.sqrt(jnp.float32(big_in))
    w_big = jax.random.uniform(kw2, (output_dim, big_in),
                               minval=-bound2, maxval=bound2, dtype=jnp.float32)
    params_big = prepare_fc_params(w_big, bias, mxu_dtype=jnp.float32)
    out_big = jax.block_until_ready(fc_layer(x_big, params_big, use_activation=True))
    ref_big = jnp.tanh(x_big) @ w_big.T + bias
    assert jnp.allclose(out_big, ref_big, atol=1e-3, rtol=1e-3), \
        float(jnp.max(jnp.abs(out_big - ref_big)))

    print("KERNEL_OK")
</pallas_src>

<mosaic_0001>
module attributes {stable_mosaic.version = 11 : i64} {
  func.func @_fc_kernel_single_k(%arg0: i32, %arg1: i32, %arg2: memref<16x128xf32, #tpu.memory_space<vmem>>, %arg3: memref<128x128xbf16, #tpu.memory_space<vmem>>, %arg4: memref<1x128xf32, #tpu.memory_space<vmem>>, %arg5: memref<16x128xf32, #tpu.memory_space<vmem>>) attributes {dimension_semantics = [#tpu.dimension_semantics<parallel>, #tpu.dimension_semantics<parallel>], iteration_bounds = array<i64: 1, 1>, scalar_prefetch = 0 : i64, scratch_operands = 0 : i64, tpu.core_type = #tpu.core_type<tc>, window_params = [{transform_indices = @transform_0, window_bounds = array<i64: 16, 128>}, {transform_indices = @transform_1, window_bounds = array<i64: 128, 128>}, {transform_indices = @transform_2, window_bounds = array<i64: 1, 128>}, {transform_indices = @transform_3, window_bounds = array<i64: 16, 128>}]} {
    %c0 = arith.constant 0 : index
    %c0_0 = arith.constant 0 : index
    %0 = vector.load %arg2[%c0, %c0_0] : memref<16x128xf32, #tpu.memory_space<vmem>>, vector<16x128xf32>
    %1 = math.tanh %0 : vector<16x128xf32>
    %2 = arith.truncf %1 : vector<16x128xf32> to vector<16x128xbf16>
    %c0_1 = arith.constant 0 : index
    %c0_2 = arith.constant 0 : index
    %3 = vector.load %arg3[%c0_1, %c0_2] : memref<128x128xbf16, #tpu.memory_space<vmem>>, vector<128x128xbf16>
    %cst = arith.constant dense<0.000000e+00> : vector<16x128xf32>
    %4 = tpu.matmul %2, %3, %cst {dimension_numbers = #tpu.dot_dimension_numbers<[1], [0], [0], [1], [0, 0, 1, 1], [], []>} : vector<16x128xbf16>, vector<128x128xbf16>, vector<16x128xf32> -> vector<16x128xf32>
    %c0_3 = arith.constant 0 : index
    %c0_4 = arith.constant 0 : index
    %5 = vector.load %arg4[%c0_3, %c0_4] : memref<1x128xf32, #tpu.memory_space<vmem>>, vector<1x128xf32>
    %6 = vector.broadcast %5 : vector<1x128xf32> to vector<16x128xf32>
    %7 = arith.addf %4, %6 : vector<16x128xf32>
    %c0_5 = arith.constant 0 : index
    %c0_6 = arith.constant 0 : index
    %8 = vector.load %arg5[%c0_5, %c0_6] : memref<16x128xf32, #tpu.memory_space<vmem>>, vector<16x128xf32>
    tpu.vector_store %arg5[%c0_5, %c0_6], %7 {strides = array<i32>} : memref<16x128xf32, #tpu.memory_space<vmem>>, vector<16x128xf32>,
    return
  }
  func.func @transform_0(%arg0: i32, %arg1: i32) -> (i32, i32) {
    %c0_i32 = arith.constant 0 : i32
    %c0_i32_0 = arith.constant 0 : i32
    return %arg0, %c0_i32 : i32, i32
  }
  func.func @transform_1(%arg0: i32, %arg1: i32) -> (i32, i32) {
    %c0_i32 = arith.constant 0 : i32
    %c0_i32_0 = arith.constant 0 : i32
    return %c0_i32, %arg1 : i32, i32
  }
  func.func @transform_2(%arg0: i32, %arg1: i32) -> (i32, i32) {
    %c0_i32 = arith.constant 0 : i32
    %c0_i32_0 = arith.constant 0 : i32
    return %c0_i32, %arg1 : i32, i32
  }
  func.func @transform_3(%arg0: i32, %arg1: i32) -> (i32, i32) {
    %c0_i32 = arith.constant 0 : i32
    return %arg0, %arg1 : i32, i32
  }
}

</mosaic_0001>

<llo_original>
// kernel: tpu_custom_call.1
$region0: #{tpu_custom_call.1}
  #allocation0 [shape = 'u32[]', space=smem, size = 0x4, offset = 0x4, fixed_abs, tag = 'smem constant byte address 0x4 - core index']
  #allocation1 [shape = 'u32[144,128]{1,0:T(1,128)}', space=vmem, size = 0x12000, scoped, tag = 'internal scratch']
  %s0 = inlined_call_operand.hbm [shape: f32[16,128], index: 0, kind: input, shape index: {}]
  %s1 = inlined_call_operand.hbm [shape: bf16[128,128], index: 1, kind: input, shape index: {}]
  %s2 = inlined_call_operand.vmem [shape: f32[1,128], index: 2, kind: input, shape index: {}]
  %s3 = inlined_call_operand.hbm [shape: f32[16,128], index: 3, kind: output, shape index: {}]
  %s4 = sld [smem:[#allocation0]]
  $region30: #{tpu_custom_call.1} parent=0
    _
  %s6 = ssub.s32 1, %s4
  %s7 = scalar_select 0, %s6, %s4
  $region1: #{tpu_custom_call.1} parent=0
    #allocation2 [shape = 'u8[8192]{0}', space=vmem, size = 0x2000, scoped, tag = 'input window, operand 0, single buffered']
    #allocation3 [shape = 's32[1]{0}', space=sflag, size = 0x4, scoped, tag = 'scoped memory for tpu_custom_call.1']
    #allocation4 [shape = 's32[1]{0}', space=sflag, size = 0x4, scoped, tag = 'scoped memory for tpu_custom_call.1']
    #allocation5 [shape = 'u8[32768]{0}', space=vmem, size = 0x8000, scoped, tag = 'input window, operand 1, single buffered']
    #allocation6 [shape = 's32[1]{0}', space=sflag, size = 0x4, scoped, tag = 'scoped memory for tpu_custom_call.1']
    #allocation7 [shape = 'u8[8192]{0}', space=vmem, size = 0x2000, scoped, tag = 'output window, operand 0, single buffered']
    %8 = vsyncpa [#allocation3], 0
    %9 = vsyncpa [#allocation6], 0
    %10 = vsyncpa [#allocation4], 0
    // Predicated region
    $region2: #{tpu_custom_call.1} parent=1 // pred_check
      _
    $region3: #{tpu_custom_call.1} parent=1 // pred_check_branch
      %12 = sbr.rel (0) target = $region5
    $region4: #{tpu_custom_call.1} parent=1 // pred_region
      %s14 = ssub.s32 256, 256
      %15 = vsyncadd [#allocation3], %s14
      %s16 = sshll.u32 [#allocation2], 4
      %s17 = int_to_ptr.vmem [resolvable:$true] %s16
      %22 = dma.hbm_to_vmem [thread:$0]  %s0, 256, %s17, [#allocation3], 128, 128, 8
    $region5: #{tpu_custom_call.1} parent=1 // pred_fallthru
      _
    // Predicated region
    $region6: #{tpu_custom_call.1} parent=1 // pred_check
      _
    $region7: #{tpu_custom_call.1} parent=1 // pred_check_branch
      %24 = sbr.rel (0) target = $region9
    $region8: #{tpu_custom_call.1} parent=1 // pred_region
      %s26 = ssub.s32 1024, 1024
      %27 = vsyncadd [#allocation6], %s26
      %s28 = sshll.u32 [#allocation5], 4
      %s29 = int_to_ptr.vmem [resolvable:$true] %s28
      %34 = dma.hbm_to_vmem [thread:$0]  %s1, 1024, %s29, [#allocation6], 64, 64, 4
    $region9: #{tpu_custom_call.1} parent=1 // pred_fallthru
      _
    // Predicated region
    $region10: #{tpu_custom_call.1} parent=1 // pred_check
      _
    $region11: #{tpu_custom_call.1} parent=1 // pred_check_branch
      %36 = sbr.rel (0) target = $region13
    $region12: #{tpu_custom_call.1} parent=1 // pred_region
      _
    $region13: #{tpu_custom_call.1} parent=1 // pred_fallthru
      _
    // Predicated region
    $region14: #{tpu_custom_call.1} parent=1 // pred_check
      _
    $region15: #{tpu_custom_call.1} parent=1 // pred_check_branch
      %38 = sbr.rel (0) target = $region17
    $region16: #{tpu_custom_call.1} parent=1 // pred_region
      %39 = dma.done [#allocation3], 256
    $region17: #{tpu_custom_call.1} parent=1 // pred_fallthru
      _
    // Predicated region
    $region18: #{tpu_custom_call.1} parent=1 // pred_check
      _
    $region19: #{tpu_custom_call.1} parent=1 // pred_check_branch
      %41 = sbr.rel (0) target = $region21
    $region20: #{tpu_custom_call.1} parent=1 // pred_region
      %42 = dma.done [#allocation6], 1024
    $region21: #{tpu_custom_call.1} parent=1 // pred_fallthru
      _
    %v44 = vld [vmem:[#allocation2] sm:$0xff]
    %v45 = vld [vmem:[#allocation2 + $0x8] sm:$0xff]
    %v46 = vtanh.pop %v44
    %v47 = vtanh.pop %v45
    %v48 = vpack.c.bf16 %v47, %v46
    %v49 = vld [vmem:[#allocation5] sm:$0xf]
    %v50 = vld [vmem:[#allocation5 + $0x4] sm:$0xf]
    %v51 = vld [vmem:[#allocation5 + $0x8] sm:$0xf]
    %v52 = vld [vmem:[#allocation5 + $0xc] sm:$0xf]
    %v53 = vld [vmem:[#allocation5 + $0x10] sm:$0xf]
    %v54 = vld [vmem:[#allocation5 + $0x14] sm:$0xf]
    %v55 = vld [vmem:[#allocation5 + $0x18] sm:$0xf]
    %v56 = vld [vmem:[#allocation5 + $0x1c] sm:$0xf]
    %v57 = vld [vmem:[#allocation5 + $0x20] sm:$0xf]
    %v58 = vld [vmem:[#allocation5 + $0x24] sm:$0xf]
    %v59 = vld [vmem:[#allocation5 + $0x28] sm:$0xf]
    %v60 = vld [vmem:[#allocation5 + $0x2c] sm:$0xf]
    %v61 = vld [vmem:[#allocation5 + $0x30] sm:$0xf]
    %v62 = vld [vmem:[#allocation5 + $0x34] sm:$0xf]
    %v63 = vld [vmem:[#allocation5 + $0x38] sm:$0xf]
    %v64 = vld [vmem:[#allocation5 + $0x3c] sm:$0xf]
    %v65 = vld [vmem:[%s2] sm:$0x1]
    %v67 = vlaneseq
    %v68 = vshrl.u32 %v67, 7
    %v69 = vsub.s32 0, %v68
    %v70 = vrot.slane %v65, %v69
    %v88 = vunpack.c.l.b16 %v49
    %v89 = vunpack.c.l.b16 %v50
    %v90 = vunpack.c.l.b16 %v51
    %v91 = vunpack.c.l.b16 %v52
    %v92 = vunpack.c.l.b16 %v53
    %v93 = vunpack.c.l.b16 %v54
    %v94 = vunpack.c.l.b16 %v55
    %v95 = vunpack.c.l.b16 %v56
    %v96 = vunpack.c.l.b16 %v57
    %v97 = vunpack.c.l.b16 %v58
    %v98 = vunpack.c.l.b16 %v59
    %v99 = vunpack.c.l.b16 %v60
    %v100 = vunpack.c.l.b16 %v61
    %v101 = vunpack.c.l.b16 %v62
    %v102 = vunpack.c.l.b16 %v63
    %v103 = vunpack.c.l.b16 %v64
    %v104 = vpack.c.b16 %v89, %v88
    %v105 = vpack.c.b16 %v91, %v90
    %v106 = vpack.c.b16 %v93, %v92
    %v107 = vpack.c.b16 %v95, %v94
    %v108 = vpack.c.b16 %v97, %v96
    %v109 = vpack.c.b16 %v99, %v98
    %v110 = vpack.c.b16 %v101, %v100
    %v111 = vpack.c.b16 %v103, %v102
    %120 = vmatprep.subr.bf16.mxu0 0
    %121 = vmatpush1.bf16.msra.mxu0 %v104
    %122 = vmatprep.subr.bf16.mxu0 0
    %123 = vmatpush1.bf16.msra.mxu0 %v105
    %124 = vmatprep.subr.bf16.mxu0 0
    %125 = vmatpush1.bf16.msra.mxu0 %v106
    %126 = vmatprep.subr.bf16.mxu0 0
    %127 = vmatpush1.bf16.msra.mxu0 %v107
    %128 = vmatprep.subr.bf16.mxu0 0
    %129 = vmatpush1.bf16.msra.mxu0 %v108
    %130 = vmatprep.subr.bf16.mxu0 0
    %131 = vmatpush1.bf16.msra.mxu0 %v109
    %132 = vmatprep.subr.bf16.mxu0 0
    %133 = vmatpush1.bf16.msra.mxu0 %v110
    %134 = vmatprep.subr.bf16.mxu0 0
    %135 = vmatpush1.bf16.msra.mxu0 %v111
    %136 = vmatprep.subr.bf16.mxu0 0
    %137 = vmatpush1.bf16.msra.mxu0 0
    %138 = vmatprep.subr.bf16.mxu0 0
    %139 = vmatpush1.bf16.msra.mxu0 0
    %140 = vmatprep.subr.bf16.mxu0 0
    %141 = vmatpush1.bf16.msra.mxu0 0
    %142 = vmatprep.subr.bf16.mxu0 0
    %143 = vmatpush1.bf16.msra.mxu0 0
    %144 = vmatprep.subr.bf16.mxu0 0
    %145 = vmatpush1.bf16.msra.mxu0 0
    %146 = vmatprep.subr.bf16.mxu0 0
    %147 = vmatpush1.bf16.msra.mxu0 0
    %148 = vmatprep.subr.bf16.mxu0 0
    %149 = vmatpush1.bf16.msra.mxu0 0
    %150 = vmatprep.subr.bf16.mxu0 0
    %151 = vmatpush1.bf16.msra.mxu0 0
    %152 = vmatprep.mubr.bf16.mxu0 0
    %153 = vmatmul.mubr.bf16.gmra.mrb[0].mxu0 %v48
    %v154 = vpop.f32.mrb[0].mxu0
    %v155 = vadd.f32 %v70, %v154
    %v156 = vpop.f32.mrb[0].mxu0
    %v157 = vpop.f32.mrb[0].mxu0
    %v158 = vadd.f32 %v70, %v157
    %v159 = vpop.f32.mrb[0].mxu0
    %160 = vdwg.mxu0
    %161 = vst [vmem:[#allocation7] sm:$0xff] %v155
    %162 = vst [vmem:[#allocation7 + $0x8] sm:$0xff] %v158
    // Predicated region
    $region22: #{tpu_custom_call.1} parent=1 // pred_check
      _
    $region23: #{tpu_custom_call.1} parent=1 // pred_check_branch
      %164 = sbr.rel (0) target = $region25
    $region24: #{tpu_custom_call.1} parent=1 // pred_region
      %s166 = ssub.s32 256, 256
      %167 = vsyncadd [#allocation4], %s166
      %s168 = sshll.u32 [#allocation7], 4
      %s169 = int_to_ptr.vmem [resolvable:$true] %s168
      %174 = dma.vmem_to_hbm [thread:$0]  %s169, 256, %s3, [#allocation4], 128, 128, 8
    $region25: #{tpu_custom_call.1} parent=1 // pred_fallthru
      _
    // Predicated region
    $region26: #{tpu_custom_call.1} parent=1 // pred_check
      _
    $region27: #{tpu_custom_call.1} parent=1 // pred_check_branch
      %176 = sbr.rel (0) target = $region29
    $region28: #{tpu_custom_call.1} parent=1 // pred_region
      %177 = dma.done [#allocation4], 256
    $region29: #{tpu_custom_call.1} parent=1 // pred_fallthru
      _
    %178 = vsyncpa [#allocation3], 1
    %179 = vsyncpa [#allocation6], 1
    %180 = vsyncpa [#allocation4], 1

</llo_original>
